<compile_context>
chip_gen: v7x
topology: tpu7x:2x2x1
jax: 0.10.0
libtpu: 0.0.40
codegen_flags: <defaults>
</compile_context>

<pallas_src>
import functools

import jax
import jax.numpy as jnp
from jax.experimental import pallas as pl
from jax.experimental.pallas import tpu as pltpu


def _round_up(n, m):
    return ((n + m - 1) // m) * m


def _vmem_capacity_bytes():
    """Physical VMEM of the current generation; conservative fallback."""
    try:
        return int(pltpu.get_tpu_info().vmem_capacity_bytes)
    except Exception:
        return 64 * (1 << 20)   # v7x per-TensorCore size (smallest generation)


# ---------------------------------------------------------------------------
# Fused decoder kernel: L residual-projection layers + LayerNormalization.
# One HBM read and one HBM write per activation tile.
# ---------------------------------------------------------------------------
def _fused_decoder_kernel(x_ref, w_ref, alpha_ref, bias_ref, mask_ref, o_ref,
                          *, eps, feat, num_layers):
    # x_ref:     (TM, Dp)       activation row tile (input dtype)
    # w_ref:     (L, Dp, Dp)    layer weights, bf16, VMEM-resident
    # alpha_ref: (1, Dp) f32    LayerNorm scale (zero on padded lanes)
    # bias_ref:  (1, Dp) f32    LayerNorm shift (zero on padded lanes)
    # mask_ref:  (1, Dp) f32    1.0 on valid lanes, 0.0 on padded lanes
    x = x_ref[...].astype(jnp.float32)

    # --- demo decoder layers: x <- x + tanh(x @ W_l) -------------------------
    # bf16 inputs to the MXU, f32 accumulation, residual/tanh in f32.
    def layer(xv, w):
        y = jnp.dot(xv.astype(jnp.bfloat16), w,
                    preferred_element_type=jnp.float32)
        return xv + jnp.tanh(y)

    if num_layers <= 8:                       # small L: static unroll
        for l in range(num_layers):
            x = layer(x, w_ref[l])
    else:                                     # large L: bounded live ranges
        x = jax.lax.fori_loop(0, num_layers,
                              lambda l, xv: layer(xv, w_ref[l]),
                              x, unroll=2)

    # --- final LayerNormalization (torch: unbiased std, eps added to std) ---
    alpha = alpha_ref[...]                    # hoisted single reads
    bias = bias_ref[...]
    bessel = max(feat - 1, 1)                 # guard feat == 1
    # Padded feature lanes are exact zeros, so the unmasked sum is the true sum.
    mean = jnp.sum(x, axis=-1, keepdims=True) * (1.0 / feat)
    diff = x - mean
    if feat == x.shape[-1]:
        diff_m = diff
    else:
        diff_m = diff * mask_ref[...]         # mask padded lanes (diff = -mean there)
    var = jnp.sum(diff_m * diff_m, axis=-1, keepdims=True) * (1.0 / bessel)
    inv_std = pl.reciprocal(jnp.sqrt(var) + eps, approx=True)   # EUP slot
    out = alpha * diff * inv_std + bias       # padded lanes: alpha=bias=0 -> 0
    o_ref[...] = out.astype(o_ref.dtype)


# ---------------------------------------------------------------------------
# Wrapper: tile selection, lane padding (only if needed), pallas_call.
# ---------------------------------------------------------------------------
def fused_decoder_forward(x, w_p, alpha_p, bias_p, mask_p, *, feat, eps):
    """x: (B, S, D); w_p: (L, Dp, Dp) bf16; alpha_p/bias_p/mask_p: (1, Dp)."""
    b, s, d = x.shape
    num_layers, dp, _ = w_p.shape
    rows = b * s

    # --- generation-aware VMEM budget, communicated to the compiler ---------
    capacity = _vmem_capacity_bytes()
    vmem_limit = min(max((capacity * 3) // 4, 32 << 20), 96 << 20)

    # Constant operands stay VMEM-resident; single-buffer the big one.
    try:
        w_spec = pl.BlockSpec((num_layers, dp, dp), lambda i: (0, 0, 0),
                              pipeline_mode=pl.Buffered(1))
        weight_buffers = 1
    except Exception:  # older jax without pipeline_mode / Buffered
        w_spec = pl.BlockSpec((num_layers, dp, dp), lambda i: (0, 0, 0))
        weight_buffers = 2

    in_item = x.dtype.itemsize
    out_item = in_item
    weight_bytes = weight_buffers * num_layers * dp * dp * w_p.dtype.itemsize
    const_bytes = weight_bytes + 3 * 2 * 8 * dp * 4       # alpha/bias/mask bufs
    avail = max(vmem_limit - const_bytes - (4 << 20), 2 << 20)
    # double-buffered in/out tiles + ~2 f32 intermediates per row in-kernel
    bytes_per_row = dp * (2 * in_item + 2 * out_item + 8)
    tm_cap = max(8, (avail // bytes_per_row) // 8 * 8)

    # --- row-tile selection --------------------------------------------------
    # Big tiles amortize the ~0.35us per-grid-step overhead; >=4 grid steps so
    # each v7x TensorCore gets >=2 pipelined steps; tm_cap keeps everything
    # inside the scoped-VMEM budget on every generation.
    tm_target = 512
    if rows >= 32:
        tm = min(tm_target, _round_up(pl.cdiv(rows, 4), 8), tm_cap)
    else:
        tm = min(_round_up(rows, 8), tm_cap)
    grid = pl.cdiv(rows, tm)                 # partial last tile is masked; no row pad

    # --- lane padding only when D is not a multiple of 128 -------------------
    x2 = x.reshape(rows, d)
    if dp != d:
        x2 = jnp.pad(x2, ((0, 0), (0, dp - d)))   # padded lanes: exact zeros

    flops = 2 * rows * dp * dp * num_layers
    transcendentals = rows * dp * num_layers + 2 * rows
    bytes_accessed = (rows * dp * (in_item + out_item)
                      + num_layers * dp * dp * w_p.dtype.itemsize
                      + 3 * dp * 4)

    out = pl.pallas_call(
        functools.partial(_fused_decoder_kernel, eps=eps, feat=d,
                          num_layers=num_layers),
        out_shape=jax.ShapeDtypeStruct((rows, dp), x.dtype),
        grid_spec=pltpu.PrefetchScalarGridSpec(
            num_scalar_prefetch=0,
            grid=(grid,),
            in_specs=[
                pl.BlockSpec((tm, dp), lambda i: (i, 0)),      # activations
                w_spec,                                        # weights (resident)
                pl.BlockSpec((1, dp), lambda i: (0, 0)),       # alpha
                pl.BlockSpec((1, dp), lambda i: (0, 0)),       # bias
                pl.BlockSpec((1, dp), lambda i: (0, 0)),       # lane mask
            ],
            out_specs=pl.BlockSpec((tm, dp), lambda i: (i, 0)),
        ),
        compiler_params=pltpu.CompilerParams(
            dimension_semantics=("parallel",),
            vmem_limit_bytes=vmem_limit),
        cost_estimate=pl.CostEstimate(flops=flops,
                                      transcendentals=transcendentals,
                                      bytes_accessed=bytes_accessed),
    )(x2, w_p, alpha_p, bias_p, mask_p)

    if dp != d:
        out = out[:, :d]
    return out.reshape(b, s, d)


# ---------------------------------------------------------------------------
# Decoder: mirrors the PyTorch module (layer loop + final LayerNormalization),
# fused into one pallas_call. Constant prep (pad + bf16 cast) done once here.
# ---------------------------------------------------------------------------
class Decoder:
    def __init__(self, input_features, layer_weights, eps=1e-6):
        d = int(input_features)
        dp = _round_up(d, 128)
        self.d, self.dp, self.eps = d, dp, eps
        w = jnp.asarray(layer_weights, jnp.float32)               # (L, D, D)
        self.num_layers = int(w.shape[0])
        self.w_p = jnp.pad(w, ((0, 0), (0, dp - d), (0, dp - d))
                           ).astype(jnp.bfloat16)                 # (L, Dp, Dp)
        self.alpha = jnp.ones((d,), jnp.float32)                  # nn.Parameter ones
        self.bias = jnp.zeros((d,), jnp.float32)                  # nn.Parameter zeros
        self.alpha_p = jnp.pad(self.alpha, (0, dp - d)).reshape(1, dp)
        self.bias_p = jnp.pad(self.bias, (0, dp - d)).reshape(1, dp)
        self.mask_p = jnp.pad(jnp.ones((d,), jnp.float32),
                              (0, dp - d)).reshape(1, dp)

    def __call__(self, x, encoder_output, src_mask, tgt_mask):
        # encoder_output / masks would feed cross-attention in real
        # DecoderBlocks; the demo residual-projection layers ignore them.
        del encoder_output, src_mask, tgt_mask
        return fused_decoder_forward(x, self.w_p, self.alpha_p, self.bias_p,
                                     self.mask_p, feat=self.d, eps=self.eps)


# ---------------------------------------------------------------------------
# main
# ---------------------------------------------------------------------------
if __name__ == "__main__":
    B, S, D, L = 2, 64, 128, 2          # small decoder shapes, lane-dense D
    key = jax.random.PRNGKey(0)
    kx, ke, kw = jax.random.split(key, 3)

    x = jax.random.normal(kx, (B, S, D), dtype=jnp.float32)
    encoder_output = jax.random.normal(ke, (B, S, D), dtype=jnp.float32)
    src_mask = jnp.ones((B, 1, 1, S), dtype=jnp.float32)
    tgt_mask = jnp.tril(jnp.ones((S, S), dtype=jnp.float32))[None, None]

    layer_weights = 0.05 * jax.random.normal(kw, (L, D, D), dtype=jnp.float32)

    decoder = Decoder(D, layer_weights)
    fwd = jax.jit(decoder.__call__)
    out = jax.block_until_ready(fwd(x, encoder_output, src_mask, tgt_mask))

    # Pure-JAX reference (same layer math: bf16 matmul / f32 accumulate;
    # torch-style unbiased-std LayerNorm with eps added to std).
    def ref_ln(v, a, b2, eps=1e-6):
        mean = v.mean(-1, keepdims=True)
        diff = v - mean
        std = jnp.sqrt((diff * diff).sum(-1, keepdims=True) / (v.shape[-1] - 1))
        return a * diff / (std + eps) + b2

    xr = x
    for l in range(L):
        y = jnp.dot(xr.astype(jnp.bfloat16),
                    layer_weights[l].astype(jnp.bfloat16),
                    preferred_element_type=jnp.float32)
        xr = xr + jnp.tanh(y)
    ref = ref_ln(xr, decoder.alpha, decoder.bias)

    assert out.shape == (B, S, D)
    err = float(jnp.max(jnp.abs(out - ref)))
    assert err < 2e-2, f"max abs error {err}"
    print("KERNEL_OK")
</pallas_src>

<mosaic_0001>
module attributes {stable_mosaic.version = 11 : i64} {
  func.func @_fused_decoder_kernel(%arg0: i32, %arg1: memref<32x128xf32, #tpu.memory_space<vmem>>, %arg2: memref<2x128x128xbf16, #tpu.memory_space<vmem>>, %arg3: memref<1x128xf32, #tpu.memory_space<vmem>>, %arg4: memref<1x128xf32, #tpu.memory_space<vmem>>, %arg5: memref<1x128xf32, #tpu.memory_space<vmem>>, %arg6: memref<32x128xf32, #tpu.memory_space<vmem>>) attributes {dimension_semantics = [#tpu.dimension_semantics<parallel>], iteration_bounds = array<i64: 4>, scalar_prefetch = 0 : i64, scratch_operands = 0 : i64, tpu.core_type = #tpu.core_type<tc>, window_params = [{transform_indices = @transform_0, window_bounds = array<i64: 32, 128>}, {pipeline_mode = #tpu.pipeline_mode<synchronous>, transform_indices = @transform_1, window_bounds = array<i64: 2, 128, 128>}, {pipeline_mode = #tpu.pipeline_mode<synchronous>, transform_indices = @transform_2, window_bounds = array<i64: 1, 128>}, {pipeline_mode = #tpu.pipeline_mode<synchronous>, transform_indices = @transform_3, window_bounds = array<i64: 1, 128>}, {pipeline_mode = #tpu.pipeline_mode<synchronous>, transform_indices = @transform_4, window_bounds = array<i64: 1, 128>}, {transform_indices = @transform_5, window_bounds = array<i64: 32, 128>}]} {
    %c0 = arith.constant 0 : index
    %c0_0 = arith.constant 0 : index
    %0 = vector.load %arg1[%c0, %c0_0] : memref<32x128xf32, #tpu.memory_space<vmem>>, vector<32x128xf32>
    %c0_1 = arith.constant 0 : index
    %c0_2 = arith.constant 0 : index
    %c0_3 = arith.constant 0 : index
    %1 = vector.load %arg2[%c0_1, %c0_2, %c0_3] : memref<2x128x128xbf16, #tpu.memory_space<vmem>>, vector<1x128x128xbf16>
    %2 = vector.shape_cast %1 : vector<1x128x128xbf16> to vector<128x128xbf16>
    %3 = arith.truncf %0 : vector<32x128xf32> to vector<32x128xbf16>
    %cst = arith.constant dense<0.000000e+00> : vector<32x128xf32>
    %4 = tpu.matmul %3, %2, %cst {dimension_numbers = #tpu.dot_dimension_numbers<[1], [0], [0], [1], [0, 0, 1, 1], [], []>} : vector<32x128xbf16>, vector<128x128xbf16>, vector<32x128xf32> -> vector<32x128xf32>
    %5 = math.tanh %4 : vector<32x128xf32>
    %6 = arith.addf %0, %5 : vector<32x128xf32>
    %c1 = arith.constant 1 : index
    %c0_4 = arith.constant 0 : index
    %c0_5 = arith.constant 0 : index
    %7 = vector.load %arg2[%c1, %c0_4, %c0_5] : memref<2x128x128xbf16, #tpu.memory_space<vmem>>, vector<1x128x128xbf16>
    %8 = vector.shape_cast %7 : vector<1x128x128xbf16> to vector<128x128xbf16>
    %9 = arith.truncf %6 : vector<32x128xf32> to vector<32x128xbf16>
    %cst_6 = arith.constant dense<0.000000e+00> : vector<32x128xf32>
    %10 = tpu.matmul %9, %8, %cst_6 {dimension_numbers = #tpu.dot_dimension_numbers<[1], [0], [0], [1], [0, 0, 1, 1], [], []>} : vector<32x128xbf16>, vector<128x128xbf16>, vector<32x128xf32> -> vector<32x128xf32>
    %11 = math.tanh %10 : vector<32x128xf32>
    %12 = arith.addf %6, %11 : vector<32x128xf32>
    %c0_7 = arith.constant 0 : index
    %c0_8 = arith.constant 0 : index
    %13 = vector.load %arg3[%c0_7, %c0_8] : memref<1x128xf32, #tpu.memory_space<vmem>>, vector<1x128xf32>
    %c0_9 = arith.constant 0 : index
    %c0_10 = arith.constant 0 : index
    %14 = vector.load %arg4[%c0_9, %c0_10] : memref<1x128xf32, #tpu.memory_space<vmem>>, vector<1x128xf32>
    %cst_11 = arith.constant dense<0.000000e+00> : vector<32xf32>
    %15 = vector.multi_reduction <add>, %12, %cst_11 [1] : vector<32x128xf32> to vector<32xf32>
    %16 = vector.shape_cast %15 : vector<32xf32> to vector<32x1xf32>
    %cst_12 = arith.constant 7.812500e-03 : f32
    %17 = vector.broadcast %cst_12 : f32 to vector<32x1xf32>
    %18 = arith.mulf %16, %17 : vector<32x1xf32>
    %19 = vector.broadcast %18 : vector<32x1xf32> to vector<32x128xf32>
    %20 = arith.subf %12, %19 : vector<32x128xf32>
    %21 = arith.mulf %20, %20 : vector<32x128xf32>
    %cst_13 = arith.constant dense<0.000000e+00> : vector<32xf32>
    %22 = vector.multi_reduction <add>, %21, %cst_13 [1] : vector<32x128xf32> to vector<32xf32>
    %23 = vector.shape_cast %22 : vector<32xf32> to vector<32x1xf32>
    %cst_14 = arith.constant 0.00787401571 : f32
    %24 = vector.broadcast %cst_14 : f32 to vector<32x1xf32>
    %25 = arith.mulf %23, %24 : vector<32x1xf32>
    %26 = math.sqrt %25 : vector<32x1xf32>
    %cst_15 = arith.constant 9.99999997E-7 : f32
    %27 = vector.broadcast %cst_15 : f32 to vector<32x1xf32>
    %28 = arith.addf %26, %27 : vector<32x1xf32>
    %29 = tpu.reciprocal %28 {approx = true} : vector<32x1xf32> -> vector<32x1xf32>
    %30 = vector.broadcast %13 : vector<1x128xf32> to vector<32x128xf32>
    %31 = arith.mulf %30, %20 : vector<32x128xf32>
    %32 = vector.broadcast %29 : vector<32x1xf32> to vector<32x128xf32>
    %33 = arith.mulf %31, %32 : vector<32x128xf32>
    %34 = vector.broadcast %14 : vector<1x128xf32> to vector<32x128xf32>
    %35 = arith.addf %33, %34 : vector<32x128xf32>
    %c0_16 = arith.constant 0 : index
    %c0_17 = arith.constant 0 : index
    %36 = vector.load %arg6[%c0_16, %c0_17] : memref<32x128xf32, #tpu.memory_space<vmem>>, vector<32x128xf32>
    tpu.vector_store %arg6[%c0_16, %c0_17], %35 {strides = array<i32>} : memref<32x128xf32, #tpu.memory_space<vmem>>, vector<32x128xf32>,
    return
  }
  func.func @transform_0(%arg0: i32) -> (i32, i32) {
    %c0_i32 = arith.constant 0 : i32
    %c0_i32_0 = arith.constant 0 : i32
    return %arg0, %c0_i32 : i32, i32
  }
  func.func @transform_1(%arg0: i32) -> (i32, i32, i32) {
    %c0_i32 = arith.constant 0 : i32
    %c0_i32_0 = arith.constant 0 : i32
    %c0_i32_1 = arith.constant 0 : i32
    %c0_i32_2 = arith.constant 0 : i32
    return %c0_i32, %c0_i32_0, %c0_i32_1 : i32, i32, i32
  }
  func.func @transform_2(%arg0: i32) -> (i32, i32) {
    %c0_i32 = arith.constant 0 : i32
    %c0_i32_0 = arith.constant 0 : i32
    %c0_i32_1 = arith.constant 0 : i32
    return %c0_i32, %c0_i32_0 : i32, i32
  }
  func.func @transform_3(%arg0: i32) -> (i32, i32) {
    %c0_i32 = arith.constant 0 : i32
    %c0_i32_0 = arith.constant 0 : i32
    %c0_i32_1 = arith.constant 0 : i32
    return %c0_i32, %c0_i32_0 : i32, i32
  }
  func.func @transform_4(%arg0: i32) -> (i32, i32) {
    %c0_i32 = arith.constant 0 : i32
    %c0_i32_0 = arith.constant 0 : i32
    %c0_i32_1 = arith.constant 0 : i32
    return %c0_i32, %c0_i32_0 : i32, i32
  }
  func.func @transform_5(%arg0: i32) -> (i32, i32) {
    %c0_i32 = arith.constant 0 : i32
    %c0_i32_0 = arith.constant 0 : i32
    return %arg0, %c0_i32 : i32, i32
  }
}

</mosaic_0001>

<llo_original>
// kernel: a_call__.1
$region0: #{a_call__.1}
  #allocation0 [shape = 'u32[]', space=smem, size = 0x4, offset = 0x4, fixed_abs, tag = 'smem constant byte address 0x4 - core index']
  #allocation1 [shape = 'u32[144,128]{1,0:T(1,128)}', space=vmem, size = 0x12000, scoped, tag = 'internal scratch']
  %s0 = inlined_call_operand.hbm [shape: f32[128,128], index: 0, kind: input, shape index: {}]
  %s1 = inlined_call_operand.hbm [shape: bf16[2,128,128], index: 1, kind: input, shape index: {}]
  %s2 = inlined_call_operand.vmem [shape: f32[1,128], index: 2, kind: input, shape index: {}, may-alias: {2,4}]
  %s3 = inlined_call_operand.vmem [shape: f32[1,128], index: 3, kind: input, shape index: {}]
  %s4 = inlined_call_operand.vmem [shape: f32[1,128], index: 4, kind: input, shape index: {}, may-alias: {2,4}]
  %s5 = inlined_call_operand.hbm [shape: f32[128,128], index: 5, kind: output, shape index: {}]
  %s6 = sld [smem:[#allocation0]]
  $region61: #{a_call__.1} parent=0
    _
  %s8 = ssub.s32 1, %s6
  %s9 = scalar_select 0, %s8, %s6
  $region1: #{a_call__.1} parent=0
    #allocation2 [shape = 'u8[32768]{0}', space=vmem, size = 0x8000, scoped, tag = 'input window, operand 0']
    #allocation3 [shape = 's32[2]{0}', space=sflag, size = 0x8, scoped, tag = 'scoped memory for a_call__.1']
    #allocation4 [shape = 's32[2]{0}', space=sflag, size = 0x8, scoped, tag = 'scoped memory for a_call__.1']
    #allocation5 [shape = 'u8[65536]{0}', space=vmem, size = 0x10000, scoped, tag = 'input window, operand 1, single buffered']
    #allocation6 [shape = 's32[1]{0}', space=sflag, size = 0x4, scoped, tag = 'scoped memory for a_call__.1']
    #allocation7 [shape = 'u8[32768]{0}', space=vmem, size = 0x8000, scoped, tag = 'output window, operand 0']
    %10 = vsyncpa [#allocation3], 0
    %s11 = scalar_lea.sflag [#allocation3], 1
    %12 = vsyncpa %s11, 0
    %13 = vsyncpa [#allocation6], 0
    %14 = vsyncpa [#allocation4], 0
    %s15 = scalar_lea.sflag [#allocation4], 1
    %16 = vsyncpa %s15, 0
    loop: start=0, step=1, limit=6
    $region2: #{a_call__.1} parent=1 // loop_pre_header
      _
    $region3: #{a_call__.1} parent=1 // loop_header
      %s18 = sphi 0, %s22
      %p19 = scmp.ge.s32.totalorder %s18, 6
      %s28 = sphi 0, %s30
      %s31 = sphi 0, %s28
      %s32 = sphi 0, %s31
      %s48 = sphi 0, %s32
      %s52 = sphi 0, %s52
      %s54 = sphi 0, %s52
      %s55 = sphi 0, %s54
      %s69 = sphi 0, %s55
      %s73 = sphi 0, %s73
      %s75 = sphi 0, %s73
      %s76 = sphi 0, %s75
      %s90 = sphi 0, %s76
      %s94 = sphi 0, %s94
      %s96 = sphi 0, %s94
      %s97 = sphi 0, %s96
      %s111 = sphi 0, %s97
      %s115 = sphi 0, %s115
      %s117 = sphi 0, %s115
      %s118 = sphi 0, %s117
      %s132 = sphi 0, %s118
      %s138 = sphi 0, %s140
      %s141 = sphi 0, %s138
      %s142 = sphi 0, %s141
      %s158 = sphi 0, %s142
    $region4: #{a_call__.1} parent=1 // loop_header_branch
      %21 = sbr.rel (%p19) target = $region8
    $region5: #{a_call__.1} parent=1 // loop_body
      %s23 = ssub.s32 %s18, 1
      %s24 = ssub.s32 %s18, 2
      %s25 = sadd.s32 %s18, 1
      %s26 = ssub.s32 %s18, %s25
      %p27 = scmp.eq.s32.totalorder %s26, 0
      %s29 = sadd.s32 %s28, 1
      %s30 = scalar_select %p27, %s28, %s29
      %p33 = pneg %p27
      %p34 = scmp.eq.s32.totalorder %s18, 3
      %p35 = por %p33, %p34
      %p36 = scmp.ne.s32.totalorder %s28, %s31
      %p37 = scmp.eq.s32.totalorder %s18, 0
      %p38 = por %p36, %p37
      %p39 = scmp.ne.s32.totalorder %s28, %s31
      %p40 = scmp.eq.s32.totalorder %s23, 3
      %p41 = por %p39, %p40
      %p42 = scmp.ne.s32.totalorder %s31, %s32
      %p43 = scmp.eq.s32.totalorder %s23, 0
      %p44 = por %p42, %p43
      %p45 = scmp.ne.s32.totalorder %s31, %s32
      %p46 = scmp.eq.s32.totalorder %s24, 3
      %p47 = por %p45, %p46
      %p49 = scmp.ne.s32.totalorder %s32, %s48
      %p50 = scmp.eq.s32.totalorder %s24, 0
      %p51 = por %p49, %p50
      %s53 = sadd.s32 %s52, 1
      %p56 = scmp.eq.s32.totalorder %s18, 3
      %p57 = scmp.ne.s32.totalorder %s52, %s54
      %p58 = scmp.eq.s32.totalorder %s18, 0
      %p59 = por %p57, %p58
      %p60 = scmp.ne.s32.totalorder %s52, %s54
      %p61 = scmp.eq.s32.totalorder %s23, 3
      %p62 = por %p60, %p61
      %p63 = scmp.ne.s32.totalorder %s54, %s55
      %p64 = scmp.eq.s32.totalorder %s23, 0
      %p65 = por %p63, %p64
      %p66 = scmp.ne.s32.totalorder %s54, %s55
      %p67 = scmp.eq.s32.totalorder %s24, 3
      %p68 = por %p66, %p67
      %p70 = scmp.ne.s32.totalorder %s55, %s69
      %p71 = scmp.eq.s32.totalorder %s24, 0
      %p72 = por %p70, %p71
      %s74 = sadd.s32 %s73, 1
      %p77 = scmp.eq.s32.totalorder %s18, 3
      %p78 = scmp.ne.s32.totalorder %s73, %s75
      %p79 = scmp.eq.s32.totalorder %s18, 0
      %p80 = por %p78, %p79
      %p81 = scmp.ne.s32.totalorder %s73, %s75
      %p82 = scmp.eq.s32.totalorder %s23, 3
      %p83 = por %p81, %p82
      %p84 = scmp.ne.s32.totalorder %s75, %s76
      %p85 = scmp.eq.s32.totalorder %s23, 0
      %p86 = por %p84, %p85
      %p87 = scmp.ne.s32.totalorder %s75, %s76
      %p88 = scmp.eq.s32.totalorder %s24, 3
      %p89 = por %p87, %p88
      %p91 = scmp.ne.s32.totalorder %s76, %s90
      %p92 = scmp.eq.s32.totalorder %s24, 0
      %p93 = por %p91, %p92
      %s95 = sadd.s32 %s94, 1
      %p98 = scmp.eq.s32.totalorder %s18, 3
      %p99 = scmp.ne.s32.totalorder %s94, %s96
      %p100 = scmp.eq.s32.totalorder %s18, 0
      %p101 = por %p99, %p100
      %p102 = scmp.ne.s32.totalorder %s94, %s96
      %p103 = scmp.eq.s32.totalorder %s23, 3
      %p104 = por %p102, %p103
      %p105 = scmp.ne.s32.totalorder %s96, %s97
      %p106 = scmp.eq.s32.totalorder %s23, 0
      %p107 = por %p105, %p106
      %p108 = scmp.ne.s32.totalorder %s96, %s97
      %p109 = scmp.eq.s32.totalorder %s24, 3
      %p110 = por %p108, %p109
      %p112 = scmp.ne.s32.totalorder %s97, %s111
      %p113 = scmp.eq.s32.totalorder %s24, 0
      %p114 = por %p112, %p113
      %s116 = sadd.s32 %s115, 1
      %p119 = scmp.eq.s32.totalorder %s18, 3
      %p120 = scmp.ne.s32.totalorder %s115, %s117
      %p121 = scmp.eq.s32.totalorder %s18, 0
      %p122 = por %p120, %p121
      %p123 = scmp.ne.s32.totalorder %s115, %s117
      %p124 = scmp.eq.s32.totalorder %s23, 3
      %p125 = por %p123, %p124
      %p126 = scmp.ne.s32.totalorder %s117, %s118
      %p127 = scmp.eq.s32.totalorder %s23, 0
      %p128 = por %p126, %p127
      %p129 = scmp.ne.s32.totalorder %s117, %s118
      %p130 = scmp.eq.s32.totalorder %s24, 3
      %p131 = por %p129, %p130
      %p133 = scmp.ne.s32.totalorder %s118, %s132
      %p134 = scmp.eq.s32.totalorder %s24, 0
      %p135 = por %p133, %p134
      %s136 = ssub.s32 %s18, %s25
      %p137 = scmp.eq.s32.totalorder %s136, 0
      %s139 = sadd.s32 %s138, 1
      %s140 = scalar_select %p137, %s138, %s139
      %p143 = pneg %p137
      %p144 = scmp.eq.s32.totalorder %s18, 3
      %p145 = por %p143, %p144
      %p146 = scmp.ne.s32.totalorder %s138, %s141
      %p147 = scmp.eq.s32.totalorder %s18, 0
      %p148 = por %p146, %p147
      %p149 = scmp.ne.s32.totalorder %s138, %s141
      %p150 = scmp.eq.s32.totalorder %s23, 3
      %p151 = por %p149, %p150
      %p152 = scmp.ne.s32.totalorder %s141, %s142
      %p153 = scmp.eq.s32.totalorder %s23, 0
      %p154 = por %p152, %p153
      %p155 = scmp.ne.s32.totalorder %s141, %s142
      %p156 = scmp.eq.s32.totalorder %s24, 3
      %p157 = por %p155, %p156
      %p159 = scmp.ne.s32.totalorder %s142, %s158
      %p160 = scmp.eq.s32.totalorder %s24, 0
      %p161 = por %p159, %p160
      %p162 = scmp.le.s32.totalorder 1, %s18
      %p163 = scmp.lt.s32.totalorder %s18, 5
      %p164 = pnand %p162, %p163
      %p165 = pneg %p164
      // Predicated region
      $region9: #{a_call__.1} parent=5 // pred_check
        _
      $region10: #{a_call__.1} parent=5 // pred_check_branch
        %167 = sbr.rel (%p164) target = $region12
      $region11: #{a_call__.1} parent=5 // pred_region
        %s168 = ssub.s32 %s18, 1
        // Predicated region
        $region13: #{a_call__.1} parent=11 // pred_check
          %p169 = pneg %p65
        $region14: #{a_call__.1} parent=11 // pred_check_branch
          %171 = sbr.rel (%p169) target = $region16
        $region15: #{a_call__.1} parent=11 // pred_region
          %s173 = ssub.s32 2048, 2048
          %174 = vsyncadd [#allocation6], %s173
          %s175 = sshll.u32 [#allocation5], 4
          %s176 = int_to_ptr.vmem [resolvable:$true] %s175
          %181 = dma.hbm_to_vmem [thread:$0]  %s1, 2048, %s176, [#allocation6], 64, 64, 4
        $region16: #{a_call__.1} parent=11 // pred_fallthru
          _
        // Predicated region
        $region17: #{a_call__.1} parent=11 // pred_check
          %p182 = pneg %p86
        $region18: #{a_call__.1} parent=11 // pred_check_branch
          %184 = sbr.rel (%p182) target = $region20
        $region19: #{a_call__.1} parent=11 // pred_region
          _
        $region20: #{a_call__.1} parent=11 // pred_fallthru
          _
        // Predicated region
        $region21: #{a_call__.1} parent=11 // pred_check
          %p185 = pneg %p107
        $region22: #{a_call__.1} parent=11 // pred_check_branch
          %187 = sbr.rel (%p185) target = $region24
        $region23: #{a_call__.1} parent=11 // pred_region
          _
        $region24: #{a_call__.1} parent=11 // pred_fallthru
          _
        // Predicated region
        $region25: #{a_call__.1} parent=11 // pred_check
          %p188 = pneg %p128
        $region26: #{a_call__.1} parent=11 // pred_check_branch
          %190 = sbr.rel (%p188) target = $region28
        $region27: #{a_call__.1} parent=11 // pred_region
          _
        $region28: #{a_call__.1} parent=11 // pred_fallthru
          _
      $region12: #{a_call__.1} parent=5 // pred_fallthru
        _
      %p191 = scmp.lt.s32.totalorder %s18, 4
      // Predicated region
      $region29: #{a_call__.1} parent=5 // pred_check
        %p192 = pneg %p191
      $region30: #{a_call__.1} parent=5 // pred_check_branch
        %194 = sbr.rel (%p192) target = $region32
      $region31: #{a_call__.1} parent=5 // pred_region
        // Predicated region
        $region33: #{a_call__.1} parent=31 // pred_check
          %p195 = pneg %p38
        $region34: #{a_call__.1} parent=31 // pred_check_branch
          %197 = sbr.rel (%p195) target = $region36
        $region35: #{a_call__.1} parent=31 // pred_region
          %s198 = sand.u32 %s28, 1
          %s199 = scalar_lea.sflag [#allocation3], %s198
          %s200 = sand.u32 %s28, 1
          %s201 = smul.addr %s200, 32
          %s202 = scalar_lea.vmem [#allocation2], %s201
          %s203 = smul.u32 4, %s18
          %s205 = ssub.s32 512, 512
          %206 = vsyncadd %s199, %s205
          %s207 = smul.addr %s203, 128
          %s208 = scalar_lea.hbm %s0, %s207
          %s209 = sshll.u32 %s202, 4
          %s210 = int_to_ptr.vmem [resolvable:$true] %s209
          %215 = dma.hbm_to_vmem [thread:$0]  %s208, 512, %s210, %s199, 128, 128, 8
        $region36: #{a_call__.1} parent=31 // pred_fallthru
          _
      $region32: #{a_call__.1} parent=5 // pred_fallthru
        _
      %p216 = scmp.le.s32.totalorder 1, %s18
      %p217 = scmp.lt.s32.totalorder %s18, 5
      %p218 = pnand %p216, %p217
      %p219 = pneg %p218
      // Predicated region
      $region37: #{a_call__.1} parent=5 // pred_check
        _
      $region38: #{a_call__.1} parent=5 // pred_check_branch
        %221 = sbr.rel (%p218) target = $region40
      $region39: #{a_call__.1} parent=5 // pred_region
        %s222 = ssub.s32 %s18, 1
        %s223 = sand.u32 %s31, 1
        %s224 = scalar_lea.sflag [#allocation3], %s223
        %s225 = sand.u32 %s31, 1
        %s226 = smul.addr %s225, 32
        %s227 = scalar_lea.vmem [#allocation2], %s226
        // Predicated region
        $region41: #{a_call__.1} parent=39 // pred_check
          %p228 = pneg %p44
        $region42: #{a_call__.1} parent=39 // pred_check_branch
          %230 = sbr.rel (%p228) target = $region44
        $region43: #{a_call__.1} parent=39 // pred_region
          %231 = dma.done %s224, 512
        $region44: #{a_call__.1} parent=39 // pred_fallthru
          _
        // Predicated region
        $region45: #{a_call__.1} parent=39 // pred_check
          %p232 = pneg %p65
        $region46: #{a_call__.1} parent=39 // pred_check_branch
          %234 = sbr.rel (%p232) target = $region48
        $region47: #{a_call__.1} parent=39 // pred_region
          %235 = dma.done [#allocation6], 2048
        $region48: #{a_call__.1} parent=39 // pred_fallthru
          _
        %s236 = sand.u32 %s31, 1
        %s237 = scalar_lea.sflag [#allocation3], %s236
        %s238 = sand.u32 %s31, 1
        %s239 = smul.addr %s238, 32
        %s240 = scalar_lea.vmem [#allocation2], %s239
        %p241 = pneg %p44
        %p242 = pneg %p41
        %p243 = pneg %p65
        %p244 = pneg %p62
        %p245 = pneg %p86
        %p246 = pneg %p83
        %p247 = pneg %p107
        %p248 = pneg %p104
        %p249 = pneg %p128
        %p250 = pneg %p125
        %p251 = pneg %p154
        %p252 = pneg %p151
        %s253 = sand.u32 %s141, 1
        %s254 = scalar_lea.sflag [#allocation4], %s253
        %s255 = sand.u32 %s141, 1
        %s256 = smul.addr %s255, 32
        %s257 = scalar_lea.vmem [#allocation7], %s256
        %s258 = smul.u32 4, %s23
        %s259 = smul.u32 4, %s23
        %v261 = vld [vmem:[%s227] sm:$0xff]
        %v262 = vld [vmem:[%s227 + $0x8] sm:$0xff]
        %v263 = vld [vmem:[%s227 + $0x10] sm:$0xff]
        %v264 = vld [vmem:[%s227 + $0x18] sm:$0xff]
        %v265 = vld [vmem:[#allocation5] sm:$0xf]
        %v266 = vld [vmem:[#allocation5 + $0x4] sm:$0xf]
        %v267 = vld [vmem:[#allocation5 + $0x8] sm:$0xf]
        %v268 = vld [vmem:[#allocation5 + $0xc] sm:$0xf]
        %v269 = vld [vmem:[#allocation5 + $0x10] sm:$0xf]
        %v270 = vld [vmem:[#allocation5 + $0x14] sm:$0xf]
        %v271 = vld [vmem:[#allocation5 + $0x18] sm:$0xf]
        %v272 = vld [vmem:[#allocation5 + $0x1c] sm:$0xf]
        %v273 = vld [vmem:[#allocation5 + $0x20] sm:$0xf]
        %v274 = vld [vmem:[#allocation5 + $0x24] sm:$0xf]
        %v275 = vld [vmem:[#allocation5 + $0x28] sm:$0xf]
        %v276 = vld [vmem:[#allocation5 + $0x2c] sm:$0xf]
        %v277 = vld [vmem:[#allocation5 + $0x30] sm:$0xf]
        %v278 = vld [vmem:[#allocation5 + $0x34] sm:$0xf]
        %v279 = vld [vmem:[#allocation5 + $0x38] sm:$0xf]
        %v280 = vld [vmem:[#allocation5 + $0x3c] sm:$0xf]
        %v281 = vpack.c.bf16 %v262, %v261
        %v282 = vpack.c.bf16 %v264, %v263
        %v299 = vunpack.c.l.b16 %v265
        %v300 = vunpack.c.l.b16 %v266
        %v301 = vunpack.c.l.b16 %v267
        %v302 = vunpack.c.l.b16 %v268
        %v303 = vunpack.c.l.b16 %v269
        %v304 = vunpack.c.l.b16 %v270
        %v305 = vunpack.c.l.b16 %v271
        %v306 = vunpack.c.l.b16 %v272
        %v307 = vunpack.c.l.b16 %v273
        %v308 = vunpack.c.l.b16 %v274
        %v309 = vunpack.c.l.b16 %v275
        %v310 = vunpack.c.l.b16 %v276
        %v311 = vunpack.c.l.b16 %v277
        %v312 = vunpack.c.l.b16 %v278
        %v313 = vunpack.c.l.b16 %v279
        %v314 = vunpack.c.l.b16 %v280
        %v315 = vpack.c.b16 %v300, %v299
        %v316 = vpack.c.b16 %v302, %v301
        %v317 = vpack.c.b16 %v304, %v303
        %v318 = vpack.c.b16 %v306, %v305
        %v319 = vpack.c.b16 %v308, %v307
        %v320 = vpack.c.b16 %v310, %v309
        %v321 = vpack.c.b16 %v312, %v311
        %v322 = vpack.c.b16 %v314, %v313
        %331 = vmatprep.subr.bf16.mxu0 0
        %332 = vmatpush1.bf16.msra.mxu0 %v315
        %333 = vmatprep.subr.bf16.mxu0 0
        %334 = vmatpush1.bf16.msra.mxu0 %v316
        %335 = vmatprep.subr.bf16.mxu0 0
        %336 = vmatpush1.bf16.msra.mxu0 %v317
        %337 = vmatprep.subr.bf16.mxu0 0
        %338 = vmatpush1.bf16.msra.mxu0 %v318
        %339 = vmatprep.subr.bf16.mxu0 0
        %340 = vmatpush1.bf16.msra.mxu0 %v319
        %341 = vmatprep.subr.bf16.mxu0 0
        %342 = vmatpush1.bf16.msra.mxu0 %v320
        %343 = vmatprep.subr.bf16.mxu0 0
        %344 = vmatpush1.bf16.msra.mxu0 %v321
        %345 = vmatprep.subr.bf16.mxu0 0
        %346 = vmatpush1.bf16.msra.mxu0 %v322
        %347 = vmatprep.subr.bf16.mxu0 0
        %348 = vmatpush1.bf16.msra.mxu0 0
        %349 = vmatprep.subr.bf16.mxu0 0
        %350 = vmatpush1.bf16.msra.mxu0 0
        %351 = vmatprep.subr.bf16.mxu0 0
        %352 = vmatpush1.bf16.msra.mxu0 0
        %353 = vmatprep.subr.bf16.mxu0 0
        %354 = vmatpush1.bf16.msra.mxu0 0
        %355 = vmatprep.subr.bf16.mxu0 0
        %356 = vmatpush1.bf16.msra.mxu0 0
        %357 = vmatprep.subr.bf16.mxu0 0
        %358 = vmatpush1.bf16.msra.mxu0 0
        %359 = vmatprep.subr.bf16.mxu0 0
        %360 = vmatpush1.bf16.msra.mxu0 0
        %361 = vmatprep.subr.bf16.mxu0 0
        %362 = vmatpush1.bf16.msra.mxu0 0
        %363 = vmatprep.mubr.bf16.mxu0 0
        %364 = vmatmul.mubr.bf16.gmra.mrb[0].mxu0 %v281
        %v365 = vpop.f32.mrb[0].mxu0
        %v366 = vadd.f32 0.0, %v365
        %v367 = vpop.f32.mrb[0].mxu0
        %v368 = vpop.f32.mrb[0].mxu0
        %v369 = vadd.f32 0.0, %v368
        %v370 = vpop.f32.mrb[0].mxu0
        %371 = vmatprep.mubr.bf16.mxu0 0
        %372 = vmatmul.mubr.bf16.gmra.mrb[0].mxu0 %v282
        %v373 = vpop.f32.mrb[0].mxu0
        %v374 = vadd.f32 0.0, %v373
        %v375 = vpop.f32.mrb[0].mxu0
        %v376 = vpop.f32.mrb[0].mxu0
        %v377 = vadd.f32 0.0, %v376
        %v378 = vpop.f32.mrb[0].mxu0
        %379 = vdwg.mxu0
        %v380 = vtanh.pop %v366
        %v381 = vtanh.pop %v369
        %v382 = vtanh.pop %v374
        %v383 = vtanh.pop %v377
        %v384 = vadd.f32 %v261, %v380
        %v385 = vadd.f32 %v262, %v381
        %v386 = vadd.f32 %v263, %v382
        %v387 = vadd.f32 %v264, %v383
        %s388 = scalar_lea.vmem [#allocation5], 64
        %v389 = vld [vmem:[%s388] sm:$0xf]
        %v390 = vld [vmem:[%s388 + $0x4] sm:$0xf]
        %v391 = vld [vmem:[%s388 + $0x8] sm:$0xf]
        %v392 = vld [vmem:[%s388 + $0xc] sm:$0xf]
        %v393 = vld [vmem:[%s388 + $0x10] sm:$0xf]
        %v394 = vld [vmem:[%s388 + $0x14] sm:$0xf]
        %v395 = vld [vmem:[%s388 + $0x18] sm:$0xf]
        %v396 = vld [vmem:[%s388 + $0x1c] sm:$0xf]
        %v397 = vld [vmem:[%s388 + $0x20] sm:$0xf]
        %v398 = vld [vmem:[%s388 + $0x24] sm:$0xf]
        %v399 = vld [vmem:[%s388 + $0x28] sm:$0xf]
        %v400 = vld [vmem:[%s388 + $0x2c] sm:$0xf]
        %v401 = vld [vmem:[%s388 + $0x30] sm:$0xf]
        %v402 = vld [vmem:[%s388 + $0x34] sm:$0xf]
        %v403 = vld [vmem:[%s388 + $0x38] sm:$0xf]
        %v404 = vld [vmem:[%s388 + $0x3c] sm:$0xf]
        %v405 = vpack.c.bf16 %v385, %v384
        %v406 = vpack.c.bf16 %v387, %v386
        %v423 = vunpack.c.l.b16 %v389
        %v424 = vunpack.c.l.b16 %v390
        %v425 = vunpack.c.l.b16 %v391
        %v426 = vunpack.c.l.b16 %v392
        %v427 = vunpack.c.l.b16 %v393
        %v428 = vunpack.c.l.b16 %v394
        %v429 = vunpack.c.l.b16 %v395
        %v430 = vunpack.c.l.b16 %v396
        %v431 = vunpack.c.l.b16 %v397
        %v432 = vunpack.c.l.b16 %v398
        %v433 = vunpack.c.l.b16 %v399
        %v434 = vunpack.c.l.b16 %v400
        %v435 = vunpack.c.l.b16 %v401
        %v436 = vunpack.c.l.b16 %v402
        %v437 = vunpack.c.l.b16 %v403
        %v438 = vunpack.c.l.b16 %v404
        %v439 = vpack.c.b16 %v424, %v423
        %v440 = vpack.c.b16 %v426, %v425
        %v441 = vpack.c.b16 %v428, %v427
        %v442 = vpack.c.b16 %v430, %v429
        %v443 = vpack.c.b16 %v432, %v431
        %v444 = vpack.c.b16 %v434, %v433
        %v445 = vpack.c.b16 %v436, %v435
        %v446 = vpack.c.b16 %v438, %v437
        %455 = vmatprep.subr.bf16.mxu0 0
        %456 = vmatpush1.bf16.msra.mxu0 %v439
        %457 = vmatprep.subr.bf16.mxu0 0
        %458 = vmatpush1.bf16.msra.mxu0 %v440
        %459 = vmatprep.subr.bf16.mxu0 0
        %460 = vmatpush1.bf16.msra.mxu0 %v441
        %461 = vmatprep.subr.bf16.mxu0 0
        %462 = vmatpush1.bf16.msra.mxu0 %v442
        %463 = vmatprep.subr.bf16.mxu0 0
        %464 = vmatpush1.bf16.msra.mxu0 %v443
        %465 = vmatprep.subr.bf16.mxu0 0
        %466 = vmatpush1.bf16.msra.mxu0 %v444
        %467 = vmatprep.subr.bf16.mxu0 0
        %468 = vmatpush1.bf16.msra.mxu0 %v445
        %469 = vmatprep.subr.bf16.mxu0 0
        %470 = vmatpush1.bf16.msra.mxu0 %v446
        %471 = vmatprep.subr.bf16.mxu0 0
        %472 = vmatpush1.bf16.msra.mxu0 0
        %473 = vmatprep.subr.bf16.mxu0 0
        %474 = vmatpush1.bf16.msra.mxu0 0
        %475 = vmatprep.subr.bf16.mxu0 0
        %476 = vmatpush1.bf16.msra.mxu0 0
        %477 = vmatprep.subr.bf16.mxu0 0
        %478 = vmatpush1.bf16.msra.mxu0 0
        %479 = vmatprep.subr.bf16.mxu0 0
        %480 = vmatpush1.bf16.msra.mxu0 0
        %481 = vmatprep.subr.bf16.mxu0 0
        %482 = vmatpush1.bf16.msra.mxu0 0
        %483 = vmatprep.subr.bf16.mxu0 0
        %484 = vmatpush1.bf16.msra.mxu0 0
        %485 = vmatprep.subr.bf16.mxu0 0
        %486 = vmatpush1.bf16.msra.mxu0 0
        %487 = vmatprep.mubr.bf16.mxu0 0
        %488 = vmatmul.mubr.bf16.gmra.mrb[0].mxu0 %v405
        %v489 = vpop.f32.mrb[0].mxu0
        %v490 = vadd.f32 0.0, %v489
        %v491 = vpop.f32.mrb[0].mxu0
        %v492 = vpop.f32.mrb[0].mxu0
        %v493 = vadd.f32 0.0, %v492
        %v494 = vpop.f32.mrb[0].mxu0
        %495 = vmatprep.mubr.bf16.mxu0 0
        %496 = vmatmul.mubr.bf16.gmra.mrb[0].mxu0 %v406
        %v497 = vpop.f32.mrb[0].mxu0
        %v498 = vadd.f32 0.0, %v497
        %v499 = vpop.f32.mrb[0].mxu0
        %v500 = vpop.f32.mrb[0].mxu0
        %v501 = vadd.f32 0.0, %v500
        %v502 = vpop.f32.mrb[0].mxu0
        %503 = vdwg.mxu0
        %v504 = vtanh.pop %v490
        %v505 = vtanh.pop %v493
        %v506 = vtanh.pop %v498
        %v507 = vtanh.pop %v501
        %v508 = vadd.f32 %v384, %v504
        %v509 = vadd.f32 %v385, %v505
        %v510 = vadd.f32 %v386, %v506
        %v511 = vadd.f32 %v387, %v507
        %v512 = vld [vmem:[%s2] sm:$0x1]
        %v513 = vld [vmem:[%s3] sm:$0x1]
        %514 = vadd.xlane.f32.xlu0 %v508
        %v515 = vpop.xlane.xlu0 %514
        %516 = vadd.xlane.f32.xlu0 %v509
        %v517 = vpop.xlane.xlu0 %516
        %518 = vadd.xlane.f32.xlu0 %v510
        %v519 = vpop.xlane.xlu0 %518
        %520 = vadd.xlane.f32.xlu0 %v511
        %v521 = vpop.xlane.xlu0 %520
        %v522 = vmul.f32 %v515, 0.0078125
        %v523 = vmul.f32 %v517, 0.0078125
        %v524 = vmul.f32 %v519, 0.0078125
        %v525 = vmul.f32 %v521, 0.0078125
        %v526 = vsub.f32 %v508, %v522
        %v527 = vsub.f32 %v509, %v523
        %v528 = vsub.f32 %v510, %v524
        %v529 = vsub.f32 %v511, %v525
        %v530 = vmul.f32 %v526, %v526
        %v531 = vmul.f32 %v527, %v527
        %v532 = vmul.f32 %v528, %v528
        %v533 = vmul.f32 %v529, %v529
        %534 = vadd.xlane.f32.xlu0 %v530
        %v535 = vpop.xlane.xlu0 %534
        %536 = vadd.xlane.f32.xlu0 %v531
        %v537 = vpop.xlane.xlu0 %536
        %538 = vadd.xlane.f32.xlu0 %v532
        %v539 = vpop.xlane.xlu0 %538
        %540 = vadd.xlane.f32.xlu0 %v533
        %v541 = vpop.xlane.xlu0 %540
        %v542 = vmul.f32 %v535, 0.007874016
        %v543 = vmul.f32 %v537, 0.007874016
        %v544 = vmul.f32 %v539, 0.007874016
        %v545 = vmul.f32 %v541, 0.007874016
        %v546 = vrsqrt.pop %v542
        %v547 = vmul.f32 %v542, %v546
        %vm548 = vcmp.eq.f32.partialorder %v542, inf
        %v549 = vsel %vm548, %v542, %v547
        %vm550 = vcmp.eq.f32.partialorder %v542, 0.0
        %v551 = vand.u32 %v542, 2147483648
        %v552 = vsel %vm550, %v551, %v549
        %v553 = vrsqrt.pop %v543
        %v554 = vmul.f32 %v543, %v553
        %vm555 = vcmp.eq.f32.partialorder %v543, inf
        %v556 = vsel %vm555, %v543, %v554
        %vm557 = vcmp.eq.f32.partialorder %v543, 0.0
        %v558 = vand.u32 %v543, 2147483648
        %v559 = vsel %vm557, %v558, %v556
        %v560 = vrsqrt.pop %v544
        %v561 = vmul.f32 %v544, %v560
        %vm562 = vcmp.eq.f32.partialorder %v544, inf
        %v563 = vsel %vm562, %v544, %v561
        %vm564 = vcmp.eq.f32.partialorder %v544, 0.0
        %v565 = vand.u32 %v544, 2147483648
        %v566 = vsel %vm564, %v565, %v563
        %v567 = vrsqrt.pop %v545
        %v568 = vmul.f32 %v545, %v567
        %vm569 = vcmp.eq.f32.partialorder %v545, inf
        %v570 = vsel %vm569, %v545, %v568
        %vm571 = vcmp.eq.f32.partialorder %v545, 0.0
        %v572 = vand.u32 %v545, 2147483648
        %v573 = vsel %vm571, %v572, %v570
        %v574 = vadd.f32 %v552, 1e-06
        %v575 = vadd.f32 %v559, 1e-06
        %v576 = vadd.f32 %v566, 1e-06
        %v577 = vadd.f32 %v573, 1e-06
        %v578 = vrcp.pop %v574
        %v579 = vrcp.pop %v575
        %v580 = vrcp.pop %v576
        %v581 = vrcp.pop %v577
        %v583 = vlaneseq
        %v584 = vshrl.u32 %v583, 7
        %v585 = vsub.s32 0, %v584
        %v586 = vrot.slane %v512, %v585
        %v588 = vmul.f32 %v586, %v526
        %v589 = vmul.f32 %v586, %v527
        %v590 = vmul.f32 %v586, %v528
        %v591 = vmul.f32 %v586, %v529
        %v592 = vmul.f32 %v588, %v578
        %v593 = vmul.f32 %v589, %v579
        %v594 = vmul.f32 %v590, %v580
        %v595 = vmul.f32 %v591, %v581
        %v597 = vlaneseq
        %v598 = vshrl.u32 %v597, 7
        %v599 = vsub.s32 0, %v598
        %v600 = vrot.slane %v513, %v599
        %v602 = vadd.f32 %v592, %v600
        %v603 = vadd.f32 %v593, %v600
        %v604 = vadd.f32 %v594, %v600
        %v605 = vadd.f32 %v595, %v600
        %606 = vst [vmem:[%s257] sm:$0xff] %v602
        %607 = vst [vmem:[%s257 + $0x8] sm:$0xff] %v603
        %608 = vst [vmem:[%s257 + $0x10] sm:$0xff] %v604
        %609 = vst [vmem:[%s257 + $0x18] sm:$0xff] %v605
        %s610 = sand.u32 %s141, 1
        %s611 = scalar_lea.sflag [#allocation4], %s610
        %s612 = sand.u32 %s141, 1
        %s613 = smul.addr %s612, 32
        %s614 = scalar_lea.vmem [#allocation7], %s613
        // Predicated region
        $region49: #{a_call__.1} parent=39 // pred_check
          %p615 = pneg %p151
        $region50: #{a_call__.1} parent=39 // pred_check_branch
          %617 = sbr.rel (%p615) target = $region52
        $region51: #{a_call__.1} parent=39 // pred_region
          %s618 = smul.u32 4, %s23
          %s620 = ssub.s32 512, 512
          %621 = vsyncadd %s611, %s620
          %s622 = smul.addr %s618, 128
          %s623 = scalar_lea.hbm %s5, %s622
          %s624 = sshll.u32 %s614, 4
          %s625 = int_to_ptr.vmem [resolvable:$true] %s624
          %630 = dma.vmem_to_hbm [thread:$0]  %s625, 512, %s623, %s611, 128, 128, 8
        $region52: #{a_call__.1} parent=39 // pred_fallthru
          _
      $region40: #{a_call__.1} parent=5 // pred_fallthru
        _
      %p631 = scmp.le.s32.totalorder 2, %s18
      // Predicated region
      $region53: #{a_call__.1} parent=5 // pred_check
        %p632 = pneg %p631
      $region54: #{a_call__.1} parent=5 // pred_check_branch
        %634 = sbr.rel (%p632) target = $region56
      $region55: #{a_call__.1} parent=5 // pred_region
        %s635 = ssub.s32 %s18, 2
        // Predicated region
        $region57: #{a_call__.1} parent=55 // pred_check
          %p636 = pneg %p157
        $region58: #{a_call__.1} parent=55 // pred_check_branch
          %638 = sbr.rel (%p636) target = $region60
        $region59: #{a_call__.1} parent=55 // pred_region
          %s639 = sand.u32 %s142, 1
          %s640 = scalar_lea.sflag [#allocation4], %s639
          %s641 = sand.u32 %s142, 1
          %s642 = smul.addr %s641, 32
          %s643 = scalar_lea.vmem [#allocation7], %s642
          %644 = dma.done %s640, 512
        $region60: #{a_call__.1} parent=55 // pred_fallthru
          _
      $region56: #{a_call__.1} parent=5 // pred_fallthru
        _
    $region6: #{a_call__.1} parent=1 // loop_footer
      %s22 = sadd.s32 1, %s18
    $region7: #{a_call__.1} parent=1 // loop_footer_branch
      %17 = sbr.rel target = $region3
    $region8: #{a_call__.1} parent=1 // loop_exit
      _
    %645 = vsyncpa [#allocation3], 1
    %s646 = scalar_lea.sflag [#allocation3], 1
    %647 = vsyncpa %s646, 1
    %648 = vsyncpa [#allocation6], 1
    %649 = vsyncpa [#allocation4], 1
    %s650 = scalar_lea.sflag [#allocation4], 1
    %651 = vsyncpa %s650, 1

</llo_original>
